<compile_context>
chip_gen: v7x
topology: tpu7x:2x2x1
jax: 0.10.0
libtpu: 0.0.40
codegen_flags: <defaults>
</compile_context>

<pallas_src>
import jax
import jax.numpy as jnp
from jax.experimental import pallas as pl
from jax.experimental.pallas import tpu as pltpu
from typing import NamedTuple

SELU_ALPHA = 1.6732632423543772
SELU_SCALE = 1.0507009873554805

LANE = 128
_MAX_BATCH_TILE = 4096     # rows per grid step; multiple of 8
_SPLIT_THRESHOLD = 512     # below this, a single tile amortizes grid overhead best


def _cdiv(a, b):
    return -(-a // b)


def _round_up(a, b):
    return _cdiv(a, b) * b


def _selu(x):
    # scale * (max(0,x) + min(0, alpha*(exp(x)-1))).
    # exp(x)-1 kept (instead of expm1) for guaranteed Mosaic lowering support;
    # SELU(0) == 0 exactly, so zero-padded lanes stay zero through the network.
    return SELU_SCALE * jnp.where(x > 0, x, SELU_ALPHA * (jnp.exp(x) - 1.0))


class PackedKoopman(NamedTuple):
    slab: jax.Array   # (rows, slab_w) f32 packed parameter slab
    indim: int
    ctrl: int
    outdim: int
    in_w: int         # round_up(indim + ctrl, 128)  -- packed-input lane width
    h_w: int          # round_up(hidden, 128)
    o_w: int          # round_up(outdim, 128)
    offs: dict        # static row offsets into the slab


def pack_params(params):
    """One-time preprocessing (hoist out of the forward path): fuse the linear
    tail algebraically and pack every parameter into one lane-dense f32 slab."""
    f32 = lambda a: jnp.asarray(a, jnp.float32)
    w1, b1 = f32(params["w1"]), f32(params["b1"])
    w2, b2 = f32(params["w2"]), f32(params["b2"])
    w3, b3 = f32(params["w3"]), f32(params["b3"])
    K, B, R = f32(params["K"]), f32(params["B"]), f32(params["recovery"])

    indim, hidden = w1.shape
    ctrl = B.shape[0]
    outdim = R.shape[1]

    # Exact algebraic tail fusion (no nonlinearity after w3):
    #   x1 = h2 @ (w3 K R) + u @ (B R) + (b3 K R)
    KR = K @ R                 # (obs, out)
    wf = w3 @ KR               # (hidden, out)
    bf = b3 @ KR               # (out,)
    Bf = B @ R                 # (ctrl, out)

    in_w = _round_up(indim + ctrl, LANE)
    h_w = _round_up(hidden, LANE)
    o_w = _round_up(outdim, LANE)
    slab_w = max(h_w, o_w)

    def block(rows, sub, r0):
        blk = jnp.zeros((rows, slab_w), jnp.float32)
        return blk.at[r0:r0 + sub.shape[0], :sub.shape[1]].set(sub)

    # Weight sections (rows padded to the lane width of their input activation).
    w1_blk = block(in_w, w1, 0)        # consumes packed input lanes [0, indim)
    w2_blk = block(h_w, w2, 0)
    wf_blk = block(h_w, wf, 0)         # w3 @ K @ R
    bf_blk = block(in_w, Bf, indim)    # B @ R, rows aligned to u lanes [indim, indim+ctrl)

    # Biases: each at the start of its own 8-row-aligned block (aligned extracts).
    bias_blk = jnp.zeros((24, slab_w), jnp.float32)
    bias_blk = bias_blk.at[0, :hidden].set(b1)
    bias_blk = bias_blk.at[8, :hidden].set(b2)
    bias_blk = bias_blk.at[16, :outdim].set(bf)

    blocks = (("w1", w1_blk), ("w2", w2_blk), ("wf", wf_blk),
              ("Bf", bf_blk), ("b", bias_blk))
    offs, cur = {}, 0
    for name, blk in blocks:
        offs[name] = cur
        cur += blk.shape[0]
    slab = jnp.concatenate([blk for _, blk in blocks], axis=0)

    return PackedKoopman(slab=slab, indim=indim, ctrl=ctrl, outdim=outdim,
                         in_w=in_w, h_w=h_w, o_w=o_w, offs=offs)


def _make_kernel(meta: PackedKoopman, use_bf16: bool):
    in_w, h_w, o_w = meta.in_w, meta.h_w, meta.o_w
    o = meta.offs

    def mxu_dot(a, b):
        if use_bf16:   # v6e/v7x native MXU path; accumulation stays f32
            a = a.astype(jnp.bfloat16)
            b = b.astype(jnp.bfloat16)
        return jnp.dot(a, b, preferred_element_type=jnp.float32)

    def kernel(xu_ref, p_ref, out_ref):
        xu = xu_ref[...]                                    # (tm, in_w) lane-dense

        # Static, lane-dense (multiple-of-128) views into the parameter slab.
        w1 = p_ref[o["w1"]:o["w1"] + in_w, :h_w]
        w2 = p_ref[o["w2"]:o["w2"] + h_w, :h_w]
        wf = p_ref[o["wf"]:o["wf"] + h_w, :o_w]             # w3 @ K @ R
        Bf = p_ref[o["Bf"]:o["Bf"] + in_w, :o_w]            # B @ R
        b1 = p_ref[o["b"] + 0:o["b"] + 1, :h_w]             # 8-row-aligned biases
        b2 = p_ref[o["b"] + 8:o["b"] + 9, :h_w]
        bf = p_ref[o["b"] + 16:o["b"] + 17, :o_w]           # b3 @ K @ R

        # observable MLP (SELU / bias adds kept in f32 -- v5e has no bf16 VPU).
        h1 = _selu(mxu_dot(xu, w1) + b1)
        h2 = _selu(mxu_dot(h1, w2) + b2)
        # x1 = recovery(K @ observable(x0) + B @ u), algebraically folded.
        x1 = mxu_dot(h2, wf) + mxu_dot(xu, Bf) + bf
        out_ref[...] = x1.astype(out_ref.dtype)

    return kernel


def _pick_tile(batch):
    if batch < _SPLIT_THRESHOLD:
        return batch                        # one full-extent block
    tm = _round_up(_cdiv(batch, 2), 8)      # >=2 grid steps -> both v7x TCs
    return min(tm, _MAX_BATCH_TILE)


def deep_koopman_forward(x0, u, packed: PackedKoopman, *, use_bf16=False):
    batch = x0.shape[0]
    indim, ctrl, outdim = packed.indim, packed.ctrl, packed.outdim
    in_w, h_w, o_w = packed.in_w, packed.h_w, packed.o_w
    assert x0.shape == (batch, indim) and u.shape == (batch, ctrl)

    # One lane-dense packed input: lanes [0,indim)=x0, [indim,indim+ctrl)=u.
    xu = jnp.concatenate([x0.astype(jnp.float32), u.astype(jnp.float32)], axis=1)
    xu = jnp.pad(xu, ((0, 0), (0, in_w - indim - ctrl)))

    tm = _pick_tile(batch)
    grid = (_cdiv(batch, tm),)
    kernel = _make_kernel(packed, use_bf16)

    flops = 2 * batch * (in_w * h_w + h_w * h_w + h_w * o_w + in_w * o_w)
    bytes_accessed = 4 * (int(xu.size) + int(packed.slab.size) + batch * o_w)
    cost = pl.CostEstimate(flops=flops,
                           transcendentals=2 * batch * h_w,
                           bytes_accessed=bytes_accessed)

    # Grid-invariant slab: single-buffer it when large so big hidden dims still
    # fit v7x's 64 MiB VMEM (never triggered at small demo shapes).
    slab_bytes = int(packed.slab.size) * 4
    slab_kwargs = {}
    if slab_bytes > (8 << 20):
        slab_kwargs["pipeline_mode"] = pl.Buffered(1)

    cp_kwargs = dict(dimension_semantics=("parallel",))
    vmem_est = (2 * 4 * tm * (in_w + o_w)
                + (1 if slab_kwargs else 2) * slab_bytes + (2 << 20))
    if vmem_est > (12 << 20):   # would trip v5e's 16 MiB scoped-VMEM default
        cp_kwargs["vmem_limit_bytes"] = int(min(max(2 * vmem_est, 32 << 20), 64 << 20))

    out = pl.pallas_call(
        kernel,
        out_shape=jax.ShapeDtypeStruct((batch, o_w), jnp.float32),
        grid=grid,
        in_specs=[
            pl.BlockSpec((tm, in_w), lambda i: (i, 0)),
            pl.BlockSpec(packed.slab.shape, lambda i: (0, 0), **slab_kwargs),
        ],
        out_specs=pl.BlockSpec((tm, o_w), lambda i: (i, 0)),
        compiler_params=pltpu.CompilerParams(**cp_kwargs),
        cost_estimate=cost,
    )(xu, packed.slab)

    # Padded output lanes are exactly zero; drop them outside the kernel.
    return out[:, :outdim]


def _reference_forward(x0, u, p):
    # Unfused reference matching the PyTorch module's forward exactly.
    h1 = _selu(x0 @ p["w1"] + p["b1"])
    h2 = _selu(h1 @ p["w2"] + p["b2"])
    yk0 = h2 @ p["w3"] + p["b3"]
    yk1 = yk0 @ p["K"] + u @ p["B"]
    return yk1 @ p["recovery"]


def _init_params(key, indim, hidden_dim, obsdim, controldim, outdim):
    keys = jax.random.split(key, 8)

    def lin(k, fan_in, fan_out):
        # deterministic small-scale init; stored directly as [in, out]
        return (jax.random.normal(k, (fan_in, fan_out), jnp.float32)
                / jnp.sqrt(jnp.float32(fan_in)))

    return {
        "w1": lin(keys[0], indim, hidden_dim),
        "b1": jax.random.normal(keys[1], (hidden_dim,), jnp.float32) * 0.1,
        "w2": lin(keys[2], hidden_dim, hidden_dim),
        "b2": jax.random.normal(keys[3], (hidden_dim,), jnp.float32) * 0.1,
        "w3": lin(keys[4], hidden_dim, obsdim),
        "b3": jax.random.normal(keys[5], (obsdim,), jnp.float32) * 0.1,
        "K": lin(keys[6], obsdim, obsdim),
        "B": lin(keys[7], controldim, obsdim),
        "recovery": lin(jax.random.fold_in(key, 99), obsdim, outdim),
    }


if __name__ == "__main__":
    # Small shapes implied by the module's forward: x0 [B, indim], u [B, controldim]
    indim, hidden_dim, obsdim, controldim, outdim = 16, 32, 16, 8, 16

    key = jax.random.PRNGKey(0)
    kx, ku, kp = jax.random.split(key, 3)
    params = _init_params(kp, indim, hidden_dim, obsdim, controldim, outdim)

    # One-time parameter packing / tail fusion, hoisted out of the forward path.
    packed = pack_params(params)

    # batch=8 exercises the single-tile path; batch=1024 exercises the 2-step
    # "parallel" grid (tm=512) used for v7x TensorCore sharding.
    for batch in (8, 1024):
        x0 = jax.random.normal(jax.random.fold_in(kx, batch), (batch, indim), jnp.float32)
        u = jax.random.normal(jax.random.fold_in(ku, batch), (batch, controldim), jnp.float32)

        out = jax.block_until_ready(deep_koopman_forward(x0, u, packed))
        ref = _reference_forward(x0, u, params)

        assert out.shape == (batch, outdim)
        # Tail fusion reassociates fp32 sums -> ~1e-6 drift; 1e-4 tol.
        assert jnp.allclose(out, ref, atol=1e-4, rtol=1e-4), f"mismatch (batch={batch})"

    # TODO(synk): `inverse()` needs torch.linalg.inv / pinv (no Pallas equivalent);
    # only the forward pass is implemented.
    print("KERNEL_OK")
</pallas_src>

<mosaic_0001>
module attributes {stable_mosaic.version = 11 : i64} {
  func.func @kernel(%arg0: i32, %arg1: memref<8x128xf32, #tpu.memory_space<vmem>>, %arg2: memref<536x128xf32, #tpu.memory_space<vmem>>, %arg3: memref<8x128xf32, #tpu.memory_space<vmem>>) attributes {dimension_semantics = [#tpu.dimension_semantics<parallel>], iteration_bounds = array<i64: 1>, scalar_prefetch = 0 : i64, scratch_operands = 0 : i64, tpu.core_type = #tpu.core_type<tc>, window_params = [{transform_indices = @transform_0, window_bounds = array<i64: 8, 128>}, {pipeline_mode = #tpu.pipeline_mode<synchronous>, transform_indices = @transform_1, window_bounds = array<i64: 536, 128>}, {transform_indices = @transform_2, window_bounds = array<i64: 8, 128>}]} {
    %c0 = arith.constant 0 : index
    %c0_0 = arith.constant 0 : index
    %0 = vector.load %arg1[%c0, %c0_0] : memref<8x128xf32, #tpu.memory_space<vmem>>, vector<8x128xf32>
    %c0_1 = arith.constant 0 : index
    %c0_2 = arith.constant 0 : index
    %1 = vector.load %arg2[%c0_1, %c0_2] : memref<536x128xf32, #tpu.memory_space<vmem>>, vector<128x128xf32>
    %c128 = arith.constant 128 : index
    %c0_3 = arith.constant 0 : index
    %2 = vector.load %arg2[%c128, %c0_3] : memref<536x128xf32, #tpu.memory_space<vmem>>, vector<128x128xf32>
    %c256 = arith.constant 256 : index
    %c0_4 = arith.constant 0 : index
    %3 = vector.load %arg2[%c256, %c0_4] : memref<536x128xf32, #tpu.memory_space<vmem>>, vector<128x128xf32>
    %c384 = arith.constant 384 : index
    %c0_5 = arith.constant 0 : index
    %4 = vector.load %arg2[%c384, %c0_5] : memref<536x128xf32, #tpu.memory_space<vmem>>, vector<128x128xf32>
    %c512 = arith.constant 512 : index
    %c0_6 = arith.constant 0 : index
    %5 = vector.load %arg2[%c512, %c0_6] : memref<536x128xf32, #tpu.memory_space<vmem>>, vector<1x128xf32>
    %c520 = arith.constant 520 : index
    %c0_7 = arith.constant 0 : index
    %6 = vector.load %arg2[%c520, %c0_7] : memref<536x128xf32, #tpu.memory_space<vmem>>, vector<1x128xf32>
    %c528 = arith.constant 528 : index
    %c0_8 = arith.constant 0 : index
    %7 = vector.load %arg2[%c528, %c0_8] : memref<536x128xf32, #tpu.memory_space<vmem>>, vector<1x128xf32>
    %cst = arith.constant dense<0.000000e+00> : vector<8x128xf32>
    %8 = tpu.matmul %0, %1, %cst {dimension_numbers = #tpu.dot_dimension_numbers<[1], [0], [0], [1], [0, 0, 1, 1], [], []>} : vector<8x128xf32>, vector<128x128xf32>, vector<8x128xf32> -> vector<8x128xf32>
    %9 = vector.broadcast %5 : vector<1x128xf32> to vector<8x128xf32>
    %10 = arith.addf %8, %9 : vector<8x128xf32>
    %cst_9 = arith.constant 0.000000e+00 : f32
    %11 = vector.broadcast %cst_9 : f32 to vector<8x128xf32>
    %12 = arith.cmpf ogt, %10, %11 : vector<8x128xf32>
    %13 = math.exp %10 : vector<8x128xf32>
    %cst_10 = arith.constant 1.000000e+00 : f32
    %14 = vector.broadcast %cst_10 : f32 to vector<8x128xf32>
    %15 = arith.subf %13, %14 : vector<8x128xf32>
    %cst_11 = arith.constant 1.67326319 : f32
    %16 = vector.broadcast %cst_11 : f32 to vector<8x128xf32>
    %17 = arith.mulf %16, %15 : vector<8x128xf32>
    %18 = arith.select %12, %10, %17 : vector<8x128xi1>, vector<8x128xf32>
    %cst_12 = arith.constant 1.05070102 : f32
    %19 = vector.broadcast %cst_12 : f32 to vector<8x128xf32>
    %20 = arith.mulf %19, %18 : vector<8x128xf32>
    %cst_13 = arith.constant dense<0.000000e+00> : vector<8x128xf32>
    %21 = tpu.matmul %20, %2, %cst_13 {dimension_numbers = #tpu.dot_dimension_numbers<[1], [0], [0], [1], [0, 0, 1, 1], [], []>} : vector<8x128xf32>, vector<128x128xf32>, vector<8x128xf32> -> vector<8x128xf32>
    %22 = vector.broadcast %6 : vector<1x128xf32> to vector<8x128xf32>
    %23 = arith.addf %21, %22 : vector<8x128xf32>
    %cst_14 = arith.constant 0.000000e+00 : f32
    %24 = vector.broadcast %cst_14 : f32 to vector<8x128xf32>
    %25 = arith.cmpf ogt, %23, %24 : vector<8x128xf32>
    %26 = math.exp %23 : vector<8x128xf32>
    %cst_15 = arith.constant 1.000000e+00 : f32
    %27 = vector.broadcast %cst_15 : f32 to vector<8x128xf32>
    %28 = arith.subf %26, %27 : vector<8x128xf32>
    %cst_16 = arith.constant 1.67326319 : f32
    %29 = vector.broadcast %cst_16 : f32 to vector<8x128xf32>
    %30 = arith.mulf %29, %28 : vector<8x128xf32>
    %31 = arith.select %25, %23, %30 : vector<8x128xi1>, vector<8x128xf32>
    %cst_17 = arith.constant 1.05070102 : f32
    %32 = vector.broadcast %cst_17 : f32 to vector<8x128xf32>
    %33 = arith.mulf %32, %31 : vector<8x128xf32>
    %cst_18 = arith.constant dense<0.000000e+00> : vector<8x128xf32>
    %34 = tpu.matmul %33, %3, %cst_18 {dimension_numbers = #tpu.dot_dimension_numbers<[1], [0], [0], [1], [0, 0, 1, 1], [], []>} : vector<8x128xf32>, vector<128x128xf32>, vector<8x128xf32> -> vector<8x128xf32>
    %cst_19 = arith.constant dense<0.000000e+00> : vector<8x128xf32>
    %35 = tpu.matmul %0, %4, %cst_19 {dimension_numbers = #tpu.dot_dimension_numbers<[1], [0], [0], [1], [0, 0, 1, 1], [], []>} : vector<8x128xf32>, vector<128x128xf32>, vector<8x128xf32> -> vector<8x128xf32>
    %36 = arith.addf %34, %35 : vector<8x128xf32>
    %37 = vector.broadcast %7 : vector<1x128xf32> to vector<8x128xf32>
    %38 = arith.addf %36, %37 : vector<8x128xf32>
    %c0_20 = arith.constant 0 : index
    %c0_21 = arith.constant 0 : index
    %39 = vector.load %arg3[%c0_20, %c0_21] : memref<8x128xf32, #tpu.memory_space<vmem>>, vector<8x128xf32>
    tpu.vector_store %arg3[%c0_20, %c0_21], %38 {strides = array<i32>} : memref<8x128xf32, #tpu.memory_space<vmem>>, vector<8x128xf32>,
    return
  }
  func.func @transform_0(%arg0: i32) -> (i32, i32) {
    %c0_i32 = arith.constant 0 : i32
    %c0_i32_0 = arith.constant 0 : i32
    return %arg0, %c0_i32 : i32, i32
  }
  func.func @transform_1(%arg0: i32) -> (i32, i32) {
    %c0_i32 = arith.constant 0 : i32
    %c0_i32_0 = arith.constant 0 : i32
    %c0_i32_1 = arith.constant 0 : i32
    return %c0_i32, %c0_i32_0 : i32, i32
  }
  func.func @transform_2(%arg0: i32) -> (i32, i32) {
    %c0_i32 = arith.constant 0 : i32
    %c0_i32_0 = arith.constant 0 : i32
    return %arg0, %c0_i32 : i32, i32
  }
}

</mosaic_0001>

<llo_original>
// kernel: tpu_custom_call.1
$region0: #{tpu_custom_call.1}
  #allocation0 [shape = 'u32[]', space=smem, size = 0x4, offset = 0x4, fixed_abs, tag = 'smem constant byte address 0x4 - core index']
  #allocation1 [shape = 'u32[144,128]{1,0:T(1,128)}', space=vmem, size = 0x12000, scoped, tag = 'internal scratch']
  %s0 = inlined_call_operand.hbm [shape: f32[8,128], index: 0, kind: input, shape index: {}]
  %s1 = inlined_call_operand.hbm [shape: f32[536,128], index: 1, kind: input, shape index: {}]
  %s2 = inlined_call_operand.hbm [shape: f32[8,128], index: 2, kind: output, shape index: {}]
  %s3 = sld [smem:[#allocation0]]
  $region26: #{tpu_custom_call.1} parent=0
    _
  %s5 = ssub.s32 1, %s3
  %s6 = scalar_select 0, %s5, %s3
  $region1: #{tpu_custom_call.1} parent=0
    #allocation2 [shape = 'u8[4096]{0}', space=vmem, size = 0x1000, scoped, tag = 'input window, operand 0, single buffered']
    #allocation3 [shape = 's32[1]{0}', space=sflag, size = 0x4, scoped, tag = 'scoped memory for tpu_custom_call.1']
    #allocation4 [shape = 's32[1]{0}', space=sflag, size = 0x4, scoped, tag = 'scoped memory for tpu_custom_call.1']
    #allocation5 [shape = 'u8[274432]{0}', space=vmem, size = 0x43000, scoped, tag = 'input window, operand 1, single buffered']
    #allocation6 [shape = 's32[1]{0}', space=sflag, size = 0x4, scoped, tag = 'scoped memory for tpu_custom_call.1']
    #allocation7 [shape = 'u8[4096]{0}', space=vmem, size = 0x1000, scoped, tag = 'output window, operand 0, single buffered']
    %7 = vsyncpa [#allocation3], 0
    %8 = vsyncpa [#allocation6], 0
    %9 = vsyncpa [#allocation4], 0
    // Predicated region
    $region2: #{tpu_custom_call.1} parent=1 // pred_check
      _
    $region3: #{tpu_custom_call.1} parent=1 // pred_check_branch
      %11 = sbr.rel (0) target = $region5
    $region4: #{tpu_custom_call.1} parent=1 // pred_region
      %s13 = ssub.s32 128, 128
      %14 = vsyncadd [#allocation3], %s13
      %s16 = sshll.u32 [#allocation2], 4
      %s17 = int_to_ptr.vmem [resolvable:$true] %s16
      %19 = dma.hbm_to_vmem [thread:$0]  %s0, 128, %s17, [#allocation3]
    $region5: #{tpu_custom_call.1} parent=1 // pred_fallthru
      _
    // Predicated region
    $region6: #{tpu_custom_call.1} parent=1 // pred_check
      _
    $region7: #{tpu_custom_call.1} parent=1 // pred_check_branch
      %21 = sbr.rel (0) target = $region9
    $region8: #{tpu_custom_call.1} parent=1 // pred_region
      %s23 = ssub.s32 8576, 8576
      %24 = vsyncadd [#allocation6], %s23
      %s25 = sshll.u32 [#allocation5], 4
      %s26 = int_to_ptr.vmem [resolvable:$true] %s25
      %31 = dma.hbm_to_vmem [thread:$0]  %s1, 8576, %s26, [#allocation6], 128, 128, 8
    $region9: #{tpu_custom_call.1} parent=1 // pred_fallthru
      _
    // Predicated region
    $region10: #{tpu_custom_call.1} parent=1 // pred_check
      _
    $region11: #{tpu_custom_call.1} parent=1 // pred_check_branch
      %33 = sbr.rel (0) target = $region13
    $region12: #{tpu_custom_call.1} parent=1 // pred_region
      %34 = dma.done [#allocation3], 128
    $region13: #{tpu_custom_call.1} parent=1 // pred_fallthru
      _
    // Predicated region
    $region14: #{tpu_custom_call.1} parent=1 // pred_check
      _
    $region15: #{tpu_custom_call.1} parent=1 // pred_check_branch
      %36 = sbr.rel (0) target = $region17
    $region16: #{tpu_custom_call.1} parent=1 // pred_region
      %37 = dma.done [#allocation6], 8576
    $region17: #{tpu_custom_call.1} parent=1 // pred_fallthru
      _
    %v38 = vld [vmem:[#allocation2] sm:$0xff]
    %v39 = vld [vmem:[#allocation5] sm:$0xff]
    %v40 = vld [vmem:[#allocation5 + $0x8] sm:$0xff]
    %v41 = vld [vmem:[#allocation5 + $0x10] sm:$0xff]
    %v42 = vld [vmem:[#allocation5 + $0x18] sm:$0xff]
    %v43 = vld [vmem:[#allocation5 + $0x20] sm:$0xff]
    %v44 = vld [vmem:[#allocation5 + $0x28] sm:$0xff]
    %v45 = vld [vmem:[#allocation5 + $0x30] sm:$0xff]
    %v46 = vld [vmem:[#allocation5 + $0x38] sm:$0xff]
    %v47 = vld [vmem:[#allocation5 + $0x40] sm:$0xff]
    %v48 = vld [vmem:[#allocation5 + $0x48] sm:$0xff]
    %v49 = vld [vmem:[#allocation5 + $0x50] sm:$0xff]
    %v50 = vld [vmem:[#allocation5 + $0x58] sm:$0xff]
    %v51 = vld [vmem:[#allocation5 + $0x60] sm:$0xff]
    %v52 = vld [vmem:[#allocation5 + $0x68] sm:$0xff]
    %v53 = vld [vmem:[#allocation5 + $0x70] sm:$0xff]
    %v54 = vld [vmem:[#allocation5 + $0x78] sm:$0xff]
    %v55 = vld [vmem:[#allocation5 + $0x80] sm:$0xff]
    %v56 = vld [vmem:[#allocation5 + $0x88] sm:$0xff]
    %v57 = vld [vmem:[#allocation5 + $0x90] sm:$0xff]
    %v58 = vld [vmem:[#allocation5 + $0x98] sm:$0xff]
    %v59 = vld [vmem:[#allocation5 + $0xa0] sm:$0xff]
    %v60 = vld [vmem:[#allocation5 + $0xa8] sm:$0xff]
    %v61 = vld [vmem:[#allocation5 + $0xb0] sm:$0xff]
    %v62 = vld [vmem:[#allocation5 + $0xb8] sm:$0xff]
    %v63 = vld [vmem:[#allocation5 + $0xc0] sm:$0xff]
    %v64 = vld [vmem:[#allocation5 + $0xc8] sm:$0xff]
    %v65 = vld [vmem:[#allocation5 + $0xd0] sm:$0xff]
    %v66 = vld [vmem:[#allocation5 + $0xd8] sm:$0xff]
    %v67 = vld [vmem:[#allocation5 + $0xe0] sm:$0xff]
    %v68 = vld [vmem:[#allocation5 + $0xe8] sm:$0xff]
    %v69 = vld [vmem:[#allocation5 + $0xf0] sm:$0xff]
    %v70 = vld [vmem:[#allocation5 + $0xf8] sm:$0xff]
    %v71 = vld [vmem:[#allocation5 + $0x100] sm:$0xff]
    %v72 = vld [vmem:[#allocation5 + $0x108] sm:$0xff]
    %v73 = vld [vmem:[#allocation5 + $0x110] sm:$0xff]
    %v74 = vld [vmem:[#allocation5 + $0x118] sm:$0xff]
    %v75 = vld [vmem:[#allocation5 + $0x120] sm:$0xff]
    %v76 = vld [vmem:[#allocation5 + $0x128] sm:$0xff]
    %v77 = vld [vmem:[#allocation5 + $0x130] sm:$0xff]
    %v78 = vld [vmem:[#allocation5 + $0x138] sm:$0xff]
    %v79 = vld [vmem:[#allocation5 + $0x140] sm:$0xff]
    %v80 = vld [vmem:[#allocation5 + $0x148] sm:$0xff]
    %v81 = vld [vmem:[#allocation5 + $0x150] sm:$0xff]
    %v82 = vld [vmem:[#allocation5 + $0x158] sm:$0xff]
    %v83 = vld [vmem:[#allocation5 + $0x160] sm:$0xff]
    %v84 = vld [vmem:[#allocation5 + $0x168] sm:$0xff]
    %v85 = vld [vmem:[#allocation5 + $0x170] sm:$0xff]
    %v86 = vld [vmem:[#allocation5 + $0x178] sm:$0xff]
    %v87 = vld [vmem:[#allocation5 + $0x180] sm:$0xff]
    %v88 = vld [vmem:[#allocation5 + $0x188] sm:$0xff]
    %v89 = vld [vmem:[#allocation5 + $0x190] sm:$0xff]
    %v90 = vld [vmem:[#allocation5 + $0x198] sm:$0xff]
    %v91 = vld [vmem:[#allocation5 + $0x1a0] sm:$0xff]
    %v92 = vld [vmem:[#allocation5 + $0x1a8] sm:$0xff]
    %v93 = vld [vmem:[#allocation5 + $0x1b0] sm:$0xff]
    %v94 = vld [vmem:[#allocation5 + $0x1b8] sm:$0xff]
    %v95 = vld [vmem:[#allocation5 + $0x1c0] sm:$0xff]
    %v96 = vld [vmem:[#allocation5 + $0x1c8] sm:$0xff]
    %v97 = vld [vmem:[#allocation5 + $0x1d0] sm:$0xff]
    %v98 = vld [vmem:[#allocation5 + $0x1d8] sm:$0xff]
    %v99 = vld [vmem:[#allocation5 + $0x1e0] sm:$0xff]
    %v100 = vld [vmem:[#allocation5 + $0x1e8] sm:$0xff]
    %v101 = vld [vmem:[#allocation5 + $0x1f0] sm:$0xff]
    %v102 = vld [vmem:[#allocation5 + $0x1f8] sm:$0xff]
    %v103 = vld [vmem:[#allocation5 + $0x200] sm:$0x1]
    %v104 = vld [vmem:[#allocation5 + $0x208] sm:$0x1]
    %v105 = vld [vmem:[#allocation5 + $0x210] sm:$0x1]
    %v106 = vlaneseq
    %v107 = vshrl.u32 %v106, 7
    %v108 = vsub.s32 0, %v107
    %v109 = vrot.slane %v103, %v108
    %110 = vmatprep.subr.mxu0 0.0
    %111 = vmatpush1.msra.mxu0 %v39
    %112 = vmatprep.subr.mxu0 0.0
    %113 = vmatpush1.msra.mxu0 %v40
    %114 = vmatprep.subr.mxu0 0.0
    %115 = vmatpush1.msra.mxu0 %v41
    %116 = vmatprep.subr.mxu0 0.0
    %117 = vmatpush1.msra.mxu0 %v42
    %118 = vmatprep.subr.mxu0 0.0
    %119 = vmatpush1.msra.mxu0 %v43
    %120 = vmatprep.subr.mxu0 0.0
    %121 = vmatpush1.msra.mxu0 %v44
    %122 = vmatprep.subr.mxu0 0.0
    %123 = vmatpush1.msra.mxu0 %v45
    %124 = vmatprep.subr.mxu0 0.0
    %125 = vmatpush1.msra.mxu0 %v46
    %126 = vmatprep.subr.mxu0 0.0
    %127 = vmatpush1.msra.mxu0 %v47
    %128 = vmatprep.subr.mxu0 0.0
    %129 = vmatpush1.msra.mxu0 %v48
    %130 = vmatprep.subr.mxu0 0.0
    %131 = vmatpush1.msra.mxu0 %v49
    %132 = vmatprep.subr.mxu0 0.0
    %133 = vmatpush1.msra.mxu0 %v50
    %134 = vmatprep.subr.mxu0 0.0
    %135 = vmatpush1.msra.mxu0 %v51
    %136 = vmatprep.subr.mxu0 0.0
    %137 = vmatpush1.msra.mxu0 %v52
    %138 = vmatprep.subr.mxu0 0.0
    %139 = vmatpush1.msra.mxu0 %v53
    %140 = vmatprep.subr.mxu0 0.0
    %141 = vmatpush1.msra.mxu0 %v54
    %142 = vmatprep.subr.mxu0 0.0
    %143 = vmatpush1.msra.mxu0 0.0
    %144 = vmatprep.subr.mxu0 0.0
    %145 = vmatpush1.msra.mxu0 0.0
    %146 = vmatprep.subr.mxu0 0.0
    %147 = vmatpush1.msra.mxu0 0.0
    %148 = vmatprep.subr.mxu0 0.0
    %149 = vmatpush1.msra.mxu0 0.0
    %150 = vmatprep.subr.mxu0 0.0
    %151 = vmatpush1.msra.mxu0 0.0
    %152 = vmatprep.subr.mxu0 0.0
    %153 = vmatpush1.msra.mxu0 0.0
    %154 = vmatprep.subr.mxu0 0.0
    %155 = vmatpush1.msra.mxu0 0.0
    %156 = vmatprep.subr.mxu0 0.0
    %157 = vmatpush1.msra.mxu0 0.0
    %158 = vmatprep.subr.mxu0 0.0
    %159 = vmatpush1.msra.mxu0 0.0
    %160 = vmatprep.subr.mxu0 0.0
    %161 = vmatpush1.msra.mxu0 0.0
    %162 = vmatprep.subr.mxu0 0.0
    %163 = vmatpush1.msra.mxu0 0.0
    %164 = vmatprep.subr.mxu0 0.0
    %165 = vmatpush1.msra.mxu0 0.0
    %166 = vmatprep.subr.mxu0 0.0
    %167 = vmatpush1.msra.mxu0 0.0
    %168 = vmatprep.subr.mxu0 0.0
    %169 = vmatpush1.msra.mxu0 0.0
    %170 = vmatprep.subr.mxu0 0.0
    %171 = vmatpush1.msra.mxu0 0.0
    %172 = vmatprep.subr.mxu0 0.0
    %173 = vmatpush1.msra.mxu0 0.0
    %174 = vmatprep.mubr.f32.mxu0 0.0
    %175 = vmatmul.mubr.f32.gmra.mrb[0].mxu0 %v38
    %v176 = vpop.f32.mrb[0].mxu0
    %v177 = vadd.f32 %v109, %v176
    %v178 = vpop.f32.mrb[0].mxu0
    %179 = vdwg.mxu0
    %vm180 = vcmp.gt.f32.partialorder %v177, 0.0
    %v181 = vmul.f32 %v177, 1.442695
    %v182 = vpow.pop %v181
    %v183 = vsub.f32 %v182, 1.0
    %v184 = vmul.f32 %v183, 1.6732632
    %v185 = vsel %vm180, %v177, %v184
    %v186 = vmul.f32 %v185, 1.050701
    %v187 = vlaneseq
    %v188 = vshrl.u32 %v187, 7
    %v189 = vsub.s32 0, %v188
    %v190 = vrot.slane %v104, %v189
    %191 = vmatprep.subr.mxu0 0.0
    %192 = vmatpush1.msra.mxu0 %v55
    %193 = vmatprep.subr.mxu0 0.0
    %194 = vmatpush1.msra.mxu0 %v56
    %195 = vmatprep.subr.mxu0 0.0
    %196 = vmatpush1.msra.mxu0 %v57
    %197 = vmatprep.subr.mxu0 0.0
    %198 = vmatpush1.msra.mxu0 %v58
    %199 = vmatprep.subr.mxu0 0.0
    %200 = vmatpush1.msra.mxu0 %v59
    %201 = vmatprep.subr.mxu0 0.0
    %202 = vmatpush1.msra.mxu0 %v60
    %203 = vmatprep.subr.mxu0 0.0
    %204 = vmatpush1.msra.mxu0 %v61
    %205 = vmatprep.subr.mxu0 0.0
    %206 = vmatpush1.msra.mxu0 %v62
    %207 = vmatprep.subr.mxu0 0.0
    %208 = vmatpush1.msra.mxu0 %v63
    %209 = vmatprep.subr.mxu0 0.0
    %210 = vmatpush1.msra.mxu0 %v64
    %211 = vmatprep.subr.mxu0 0.0
    %212 = vmatpush1.msra.mxu0 %v65
    %213 = vmatprep.subr.mxu0 0.0
    %214 = vmatpush1.msra.mxu0 %v66
    %215 = vmatprep.subr.mxu0 0.0
    %216 = vmatpush1.msra.mxu0 %v67
    %217 = vmatprep.subr.mxu0 0.0
    %218 = vmatpush1.msra.mxu0 %v68
    %219 = vmatprep.subr.mxu0 0.0
    %220 = vmatpush1.msra.mxu0 %v69
    %221 = vmatprep.subr.mxu0 0.0
    %222 = vmatpush1.msra.mxu0 %v70
    %223 = vmatprep.subr.mxu0 0.0
    %224 = vmatpush1.msra.mxu0 0.0
    %225 = vmatprep.subr.mxu0 0.0
    %226 = vmatpush1.msra.mxu0 0.0
    %227 = vmatprep.subr.mxu0 0.0
    %228 = vmatpush1.msra.mxu0 0.0
    %229 = vmatprep.subr.mxu0 0.0
    %230 = vmatpush1.msra.mxu0 0.0
    %231 = vmatprep.subr.mxu0 0.0
    %232 = vmatpush1.msra.mxu0 0.0
    %233 = vmatprep.subr.mxu0 0.0
    %234 = vmatpush1.msra.mxu0 0.0
    %235 = vmatprep.subr.mxu0 0.0
    %236 = vmatpush1.msra.mxu0 0.0
    %237 = vmatprep.subr.mxu0 0.0
    %238 = vmatpush1.msra.mxu0 0.0
    %239 = vmatprep.subr.mxu0 0.0
    %240 = vmatpush1.msra.mxu0 0.0
    %241 = vmatprep.subr.mxu0 0.0
    %242 = vmatpush1.msra.mxu0 0.0
    %243 = vmatprep.subr.mxu0 0.0
    %244 = vmatpush1.msra.mxu0 0.0
    %245 = vmatprep.subr.mxu0 0.0
    %246 = vmatpush1.msra.mxu0 0.0
    %247 = vmatprep.subr.mxu0 0.0
    %248 = vmatpush1.msra.mxu0 0.0
    %249 = vmatprep.subr.mxu0 0.0
    %250 = vmatpush1.msra.mxu0 0.0
    %251 = vmatprep.subr.mxu0 0.0
    %252 = vmatpush1.msra.mxu0 0.0
    %253 = vmatprep.subr.mxu0 0.0
    %254 = vmatpush1.msra.mxu0 0.0
    %255 = vmatprep.mubr.f32.mxu0 0.0
    %256 = vmatmul.mubr.f32.gmra.mrb[0].mxu0 %v186
    %v257 = vpop.f32.mrb[0].mxu0
    %v258 = vadd.f32 %v190, %v257
    %v259 = vpop.f32.mrb[0].mxu0
    %260 = vdwg.mxu0
    %vm261 = vcmp.gt.f32.partialorder %v258, 0.0
    %v262 = vmul.f32 %v258, 1.442695
    %v263 = vpow.pop %v262
    %v264 = vsub.f32 %v263, 1.0
    %v265 = vmul.f32 %v264, 1.6732632
    %v266 = vsel %vm261, %v258, %v265
    %v267 = vmul.f32 %v266, 1.050701
    %268 = vmatprep.subr.mxu0 0.0
    %269 = vmatpush1.msra.mxu0 %v87
    %270 = vmatprep.subr.mxu0 0.0
    %271 = vmatpush1.msra.mxu0 %v88
    %272 = vmatprep.subr.mxu0 0.0
    %273 = vmatpush1.msra.mxu0 %v89
    %274 = vmatprep.subr.mxu0 0.0
    %275 = vmatpush1.msra.mxu0 %v90
    %276 = vmatprep.subr.mxu0 0.0
    %277 = vmatpush1.msra.mxu0 %v91
    %278 = vmatprep.subr.mxu0 0.0
    %279 = vmatpush1.msra.mxu0 %v92
    %280 = vmatprep.subr.mxu0 0.0
    %281 = vmatpush1.msra.mxu0 %v93
    %282 = vmatprep.subr.mxu0 0.0
    %283 = vmatpush1.msra.mxu0 %v94
    %284 = vmatprep.subr.mxu0 0.0
    %285 = vmatpush1.msra.mxu0 %v95
    %286 = vmatprep.subr.mxu0 0.0
    %287 = vmatpush1.msra.mxu0 %v96
    %288 = vmatprep.subr.mxu0 0.0
    %289 = vmatpush1.msra.mxu0 %v97
    %290 = vmatprep.subr.mxu0 0.0
    %291 = vmatpush1.msra.mxu0 %v98
    %292 = vmatprep.subr.mxu0 0.0
    %293 = vmatpush1.msra.mxu0 %v99
    %294 = vmatprep.subr.mxu0 0.0
    %295 = vmatpush1.msra.mxu0 %v100
    %296 = vmatprep.subr.mxu0 0.0
    %297 = vmatpush1.msra.mxu0 %v101
    %298 = vmatprep.subr.mxu0 0.0
    %299 = vmatpush1.msra.mxu0 %v102
    %300 = vmatprep.subr.mxu0 0.0
    %301 = vmatpush1.msra.mxu0 0.0
    %302 = vmatprep.subr.mxu0 0.0
    %303 = vmatpush1.msra.mxu0 0.0
    %304 = vmatprep.subr.mxu0 0.0
    %305 = vmatpush1.msra.mxu0 0.0
    %306 = vmatprep.subr.mxu0 0.0
    %307 = vmatpush1.msra.mxu0 0.0
    %308 = vmatprep.subr.mxu0 0.0
    %309 = vmatpush1.msra.mxu0 0.0
    %310 = vmatprep.subr.mxu0 0.0
    %311 = vmatpush1.msra.mxu0 0.0
    %312 = vmatprep.subr.mxu0 0.0
    %313 = vmatpush1.msra.mxu0 0.0
    %314 = vmatprep.subr.mxu0 0.0
    %315 = vmatpush1.msra.mxu0 0.0
    %316 = vmatprep.subr.mxu0 0.0
    %317 = vmatpush1.msra.mxu0 0.0
    %318 = vmatprep.subr.mxu0 0.0
    %319 = vmatpush1.msra.mxu0 0.0
    %320 = vmatprep.subr.mxu0 0.0
    %321 = vmatpush1.msra.mxu0 0.0
    %322 = vmatprep.subr.mxu0 0.0
    %323 = vmatpush1.msra.mxu0 0.0
    %324 = vmatprep.subr.mxu0 0.0
    %325 = vmatpush1.msra.mxu0 0.0
    %326 = vmatprep.subr.mxu0 0.0
    %327 = vmatpush1.msra.mxu0 0.0
    %328 = vmatprep.subr.mxu0 0.0
    %329 = vmatpush1.msra.mxu0 0.0
    %330 = vmatprep.subr.mxu0 0.0
    %331 = vmatpush1.msra.mxu0 0.0
    %332 = vmatprep.mubr.f32.mxu0 0.0
    %333 = vmatmul.mubr.f32.gmra.mrb[0].mxu0 %v38
    %v334 = vpop.f32.mrb[0].mxu0
    %v335 = vadd.f32 0.0, %v334
    %v336 = vpop.f32.mrb[0].mxu0
    %337 = vdwg.mxu0
    %338 = vmatprep.subr.mxu0 0.0
    %339 = vmatpush1.msra.mxu0 %v71
    %340 = vmatprep.subr.mxu0 0.0
    %341 = vmatpush1.msra.mxu0 %v72
    %342 = vmatprep.subr.mxu0 0.0
    %343 = vmatpush1.msra.mxu0 %v73
    %344 = vmatprep.subr.mxu0 0.0
    %345 = vmatpush1.msra.mxu0 %v74
    %346 = vmatprep.subr.mxu0 0.0
    %347 = vmatpush1.msra.mxu0 %v75
    %348 = vmatprep.subr.mxu0 0.0
    %349 = vmatpush1.msra.mxu0 %v76
    %350 = vmatprep.subr.mxu0 0.0
    %351 = vmatpush1.msra.mxu0 %v77
    %352 = vmatprep.subr.mxu0 0.0
    %353 = vmatpush1.msra.mxu0 %v78
    %354 = vmatprep.subr.mxu0 0.0
    %355 = vmatpush1.msra.mxu0 %v79
    %356 = vmatprep.subr.mxu0 0.0
    %357 = vmatpush1.msra.mxu0 %v80
    %358 = vmatprep.subr.mxu0 0.0
    %359 = vmatpush1.msra.mxu0 %v81
    %360 = vmatprep.subr.mxu0 0.0
    %361 = vmatpush1.msra.mxu0 %v82
    %362 = vmatprep.subr.mxu0 0.0
    %363 = vmatpush1.msra.mxu0 %v83
    %364 = vmatprep.subr.mxu0 0.0
    %365 = vmatpush1.msra.mxu0 %v84
    %366 = vmatprep.subr.mxu0 0.0
    %367 = vmatpush1.msra.mxu0 %v85
    %368 = vmatprep.subr.mxu0 0.0
    %369 = vmatpush1.msra.mxu0 %v86
    %370 = vmatprep.subr.mxu0 0.0
    %371 = vmatpush1.msra.mxu0 0.0
    %372 = vmatprep.subr.mxu0 0.0
    %373 = vmatpush1.msra.mxu0 0.0
    %374 = vmatprep.subr.mxu0 0.0
    %375 = vmatpush1.msra.mxu0 0.0
    %376 = vmatprep.subr.mxu0 0.0
    %377 = vmatpush1.msra.mxu0 0.0
    %378 = vmatprep.subr.mxu0 0.0
    %379 = vmatpush1.msra.mxu0 0.0
    %380 = vmatprep.subr.mxu0 0.0
    %381 = vmatpush1.msra.mxu0 0.0
    %382 = vmatprep.subr.mxu0 0.0
    %383 = vmatpush1.msra.mxu0 0.0
    %384 = vmatprep.subr.mxu0 0.0
    %385 = vmatpush1.msra.mxu0 0.0
    %386 = vmatprep.subr.mxu0 0.0
    %387 = vmatpush1.msra.mxu0 0.0
    %388 = vmatprep.subr.mxu0 0.0
    %389 = vmatpush1.msra.mxu0 0.0
    %390 = vmatprep.subr.mxu0 0.0
    %391 = vmatpush1.msra.mxu0 0.0
    %392 = vmatprep.subr.mxu0 0.0
    %393 = vmatpush1.msra.mxu0 0.0
    %394 = vmatprep.subr.mxu0 0.0
    %395 = vmatpush1.msra.mxu0 0.0
    %396 = vmatprep.subr.mxu0 0.0
    %397 = vmatpush1.msra.mxu0 0.0
    %398 = vmatprep.subr.mxu0 0.0
    %399 = vmatpush1.msra.mxu0 0.0
    %400 = vmatprep.subr.mxu0 0.0
    %401 = vmatpush1.msra.mxu0 0.0
    %402 = vmatprep.mubr.f32.mxu0 0.0
    %403 = vmatmul.mubr.f32.gmra.mrb[0].mxu0 %v267
    %v404 = vpop.f32.mrb[0].mxu0
    %v405 = vadd.f32 %v335, %v404
    %v406 = vpop.f32.mrb[0].mxu0
    %407 = vdwg.mxu0
    %v408 = vlaneseq
    %v409 = vshrl.u32 %v408, 7
    %v410 = vsub.s32 0, %v409
    %v411 = vrot.slane %v105, %v410
    %v412 = vadd.f32 %v405, %v411
    %413 = vst [vmem:[#allocation7] sm:$0xff] %v412
    // Predicated region
    $region18: #{tpu_custom_call.1} parent=1 // pred_check
      _
    $region19: #{tpu_custom_call.1} parent=1 // pred_check_branch
      %415 = sbr.rel (0) target = $region21
    $region20: #{tpu_custom_call.1} parent=1 // pred_region
      %s417 = ssub.s32 128, 128
      %418 = vsyncadd [#allocation4], %s417
      %s420 = sshll.u32 [#allocation7], 4
      %s421 = int_to_ptr.vmem [resolvable:$true] %s420
      %423 = dma.vmem_to_hbm [thread:$0]  %s421, 128, %s2, [#allocation4]
    $region21: #{tpu_custom_call.1} parent=1 // pred_fallthru
      _
    // Predicated region
    $region22: #{tpu_custom_call.1} parent=1 // pred_check
      _
    $region23: #{tpu_custom_call.1} parent=1 // pred_check_branch
      %425 = sbr.rel (0) target = $region25
    $region24: #{tpu_custom_call.1} parent=1 // pred_region
      %426 = dma.done [#allocation4], 128
    $region25: #{tpu_custom_call.1} parent=1 // pred_fallthru
      _
    %427 = vsyncpa [#allocation3], 1
    %428 = vsyncpa [#allocation6], 1
    %429 = vsyncpa [#allocation4], 1

</llo_original>
